<compile_context>
chip_gen: v7x
topology: tpu7x:2x2x1
jax: 0.10.0
libtpu: 0.0.40
codegen_flags: <defaults>
</compile_context>

<pallas_src>
import functools

import jax
import jax.numpy as jnp
from jax.experimental import pallas as pl
from jax.experimental.pallas import tpu as pltpu

_LANE_CHUNK = 512  # f32 upcast temporaries live as (TB, chunk) slabs, not (TB, D)


def _triplet_kernel(a_ref, p_ref, n_ref, o_ref, *, alpha, eps):
    tb, d = a_ref.shape
    chunk = min(d, _LANE_CHUNK)
    nchunks = (d + chunk - 1) // chunk
    s_sq = jnp.zeros((tb, 1), jnp.float32)
    n_sq = jnp.zeros((tb, 1), jnp.float32)
    # Static (fully unrolled) lane-chunked reduction: keeps live f32 temporaries
    # O(TB x chunk) instead of O(TB x D) so large D does not force TB down under
    # v7x's smaller 64 MiB VMEM.  Upcast happens in-kernel (free VPU op);
    # eps=1e-6 would underflow in bf16, so squares/sums are done in f32.
    for c in range(nchunks):
        lo = c * chunk
        w = min(chunk, d - lo)
        a = a_ref[:, lo:lo + w].astype(jnp.float32)
        p = p_ref[:, lo:lo + w].astype(jnp.float32)
        n = n_ref[:, lo:lo + w].astype(jnp.float32)
        # nn.PairwiseDistance: ||x1 - x2 + eps||_2 along the last dim.
        dp = a - p + eps
        dn = a - n + eps
        s_sq = s_sq + jnp.sum(dp * dp, axis=-1, keepdims=True)
        n_sq = n_sq + jnp.sum(dn * dn, axis=-1, keepdims=True)
    # torch.clamp(s_d - n_d + alpha, min=0.02)
    o_ref[...] = jnp.maximum(jnp.sqrt(s_sq) - jnp.sqrt(n_sq) + alpha, 0.02)


def _round_up(x, m):
    return (x + m - 1) // m * m


def _sublane_pack(dtype):
    # Rows per packed sublane group: f32 -> 8, bf16 -> 16, int8/fp8 -> 32.
    return max(8, 8 * (4 // max(1, jnp.dtype(dtype).itemsize)))


def _pick_tile_rows(B, D, dtype):
    pack = _sublane_pack(dtype)
    itemsize = jnp.dtype(dtype).itemsize
    # ~2 MiB of *native-dtype* HBM traffic per streamed (TB, D) input tile:
    # past the measured ~85% roofline knee, while 3 inputs x 2 pipeline buffers
    # (~12 MiB) plus the chunked f32 temporaries stay well inside the VMEM limit.
    budget = 2 << 20
    rows = (budget // max(1, D * itemsize)) // pack * pack
    rows = max(pack, min(rows, 4096))
    b_ceil = _round_up(B, pack)
    if rows >= b_ceil:
        # Never collapse to a single whole-batch block: keep >=2 grid steps so
        # dimension_semantics=("parallel",) has work for both v7x TensorCores.
        rows = max(pack, (b_ceil // 2) // pack * pack) if b_ceil > pack else b_ceil
    return rows


def triplet_loss(a_x, p_x, n_x, alpha, eps=1e-6, *, tile_rows=None):
    assert a_x.shape == p_x.shape == n_x.shape and a_x.ndim == 2
    assert a_x.dtype == p_x.dtype == n_x.dtype
    B, D = a_x.shape
    pack = _sublane_pack(a_x.dtype)
    TB = tile_rows if tile_rows is not None else _pick_tile_rows(B, D, a_x.dtype)
    TB = max(pack, (TB // pack) * pack)

    # No wrapper-side jnp.pad (that would re-read/write all three (B, D) inputs in
    # HBM): the grid covers B with a masked partial final block instead.  Any
    # garbage computed on out-of-range rows never reaches the (B,) result.
    grid = (pl.cdiv(B, TB),)
    kernel = functools.partial(_triplet_kernel, alpha=float(alpha), eps=float(eps))

    out = pl.pallas_call(
        kernel,
        out_shape=jax.ShapeDtypeStruct((B, 1), jnp.float32),
        grid_spec=pl.GridSpec(
            grid=grid,
            in_specs=[
                pl.BlockSpec((TB, D), lambda i: (i, 0)),
                pl.BlockSpec((TB, D), lambda i: (i, 0)),
                pl.BlockSpec((TB, D), lambda i: (i, 0)),
            ],
            out_specs=pl.BlockSpec((TB, 1), lambda i: (i, 0)),
        ),
        compiler_params=pltpu.CompilerParams(
            # Independent batch tiles: shard across v7x's two TensorCores;
            # neutral on single-core v5e/v6e.
            dimension_semantics=("parallel",),
            # 6 double-buffered ~2 MiB input tiles + chunked f32 temporaries;
            # clears v5e/v6e scoped defaults, stays under v7x's 64 MiB physical.
            vmem_limit_bytes=48 * 1024 * 1024,
        ),
    )(a_x, p_x, n_x)

    # PairwiseDistance keepdim=False semantics -> (B,)
    return out[:, 0]

    # TODO(synk): if profiling shows exposed writeback at very small D, switch to a
    # lane-dense (num_tiles, TB) output layout; not done since it is ~1/(3D) of traffic.


def triplet_loss_ref(a_x, p_x, n_x, alpha, eps=1e-6):
    a = a_x.astype(jnp.float32)
    p = p_x.astype(jnp.float32)
    n = n_x.astype(jnp.float32)
    s_d = jnp.sqrt(jnp.sum((a - p + eps) ** 2, axis=-1))
    n_d = jnp.sqrt(jnp.sum((a - n + eps) ** 2, axis=-1))
    return jnp.maximum(s_d - n_d + alpha, 0.02)


if __name__ == "__main__":
    key = jax.random.PRNGKey(0)
    alpha = 0.2

    # Case 1: small single-tile batch (matches the module's typical usage).
    k_a, k_p, k_n = jax.random.split(key, 3)
    B, D = 8, 128
    a_x = jax.random.normal(k_a, (B, D), dtype=jnp.float32)
    p_x = jax.random.normal(k_p, (B, D), dtype=jnp.float32)
    n_x = jax.random.normal(k_n, (B, D), dtype=jnp.float32)
    out = triplet_loss(a_x, p_x, n_x, alpha)
    jax.block_until_ready(out)
    ref = triplet_loss_ref(a_x, p_x, n_x, alpha)
    assert out.shape == (B,)
    assert jnp.allclose(out, ref, atol=1e-4, rtol=1e-5)

    # Case 2: non-divisible batch (B % TB != 0) -> masked partial block, no jnp.pad.
    k_a2, k_p2, k_n2 = jax.random.split(jax.random.fold_in(key, 1), 3)
    B2, D2 = 20, 256
    a2 = jax.random.normal(k_a2, (B2, D2), dtype=jnp.float32)
    p2 = jax.random.normal(k_p2, (B2, D2), dtype=jnp.float32)
    n2 = jax.random.normal(k_n2, (B2, D2), dtype=jnp.float32)
    out2 = triplet_loss(a2, p2, n2, alpha, tile_rows=8)
    jax.block_until_ready(out2)
    ref2 = triplet_loss_ref(a2, p2, n2, alpha)
    assert out2.shape == (B2,)
    assert jnp.allclose(out2, ref2, atol=1e-4, rtol=1e-5)

    # Case 3: bf16 inputs (native-width streaming, 16-row sublane packing, >=2 tiles).
    k_a3, k_p3, k_n3 = jax.random.split(jax.random.fold_in(key, 2), 3)
    B3, D3 = 24, 384
    a3 = jax.random.normal(k_a3, (B3, D3), dtype=jnp.float32).astype(jnp.bfloat16)
    p3 = jax.random.normal(k_p3, (B3, D3), dtype=jnp.float32).astype(jnp.bfloat16)
    n3 = jax.random.normal(k_n3, (B3, D3), dtype=jnp.float32).astype(jnp.bfloat16)
    out3 = triplet_loss(a3, p3, n3, alpha)
    jax.block_until_ready(out3)
    ref3 = triplet_loss_ref(a3, p3, n3, alpha)
    assert out3.shape == (B3,)
    assert jnp.allclose(out3, ref3, atol=1e-4, rtol=1e-5)

    # Case 4: D > lane-chunk (exercises the chunked f32 reduction with a remainder).
    k_a4, k_p4, k_n4 = jax.random.split(jax.random.fold_in(key, 3), 3)
    B4, D4 = 16, 640
    a4 = jax.random.normal(k_a4, (B4, D4), dtype=jnp.float32)
    p4 = jax.random.normal(k_p4, (B4, D4), dtype=jnp.float32)
    n4 = jax.random.normal(k_n4, (B4, D4), dtype=jnp.float32)
    out4 = triplet_loss(a4, p4, n4, alpha)
    jax.block_until_ready(out4)
    ref4 = triplet_loss_ref(a4, p4, n4, alpha)
    assert out4.shape == (B4,)
    assert jnp.allclose(out4, ref4, atol=1e-4, rtol=1e-5)

    print("KERNEL_OK")
</pallas_src>

<mosaic_0001>
module attributes {stable_mosaic.version = 11 : i64} {
  func.func @_triplet_kernel(%arg0: i32, %arg1: memref<8x128xf32, #tpu.memory_space<vmem>>, %arg2: memref<8x128xf32, #tpu.memory_space<vmem>>, %arg3: memref<8x128xf32, #tpu.memory_space<vmem>>, %arg4: memref<8x1xf32, #tpu.memory_space<vmem>>) attributes {dimension_semantics = [#tpu.dimension_semantics<parallel>], iteration_bounds = array<i64: 1>, scalar_prefetch = 0 : i64, scratch_operands = 0 : i64, tpu.core_type = #tpu.core_type<tc>, window_params = [{transform_indices = @transform_0, window_bounds = array<i64: 8, 128>}, {transform_indices = @transform_1, window_bounds = array<i64: 8, 128>}, {transform_indices = @transform_2, window_bounds = array<i64: 8, 128>}, {transform_indices = @transform_3, window_bounds = array<i64: 8, 1>}]} {
    %cst = arith.constant 0.000000e+00 : f32
    %0 = vector.broadcast %cst : f32 to vector<8x1xf32>
    %cst_0 = arith.constant 0.000000e+00 : f32
    %1 = vector.broadcast %cst_0 : f32 to vector<8x1xf32>
    %c0 = arith.constant 0 : index
    %c0_1 = arith.constant 0 : index
    %2 = vector.load %arg1[%c0, %c0_1] : memref<8x128xf32, #tpu.memory_space<vmem>>, vector<8x128xf32>
    %c0_2 = arith.constant 0 : index
    %c0_3 = arith.constant 0 : index
    %3 = vector.load %arg2[%c0_2, %c0_3] : memref<8x128xf32, #tpu.memory_space<vmem>>, vector<8x128xf32>
    %c0_4 = arith.constant 0 : index
    %c0_5 = arith.constant 0 : index
    %4 = vector.load %arg3[%c0_4, %c0_5] : memref<8x128xf32, #tpu.memory_space<vmem>>, vector<8x128xf32>
    %5 = arith.subf %2, %3 : vector<8x128xf32>
    %cst_6 = arith.constant 9.99999997E-7 : f32
    %6 = vector.broadcast %cst_6 : f32 to vector<8x128xf32>
    %7 = arith.addf %5, %6 : vector<8x128xf32>
    %8 = arith.subf %2, %4 : vector<8x128xf32>
    %cst_7 = arith.constant 9.99999997E-7 : f32
    %9 = vector.broadcast %cst_7 : f32 to vector<8x128xf32>
    %10 = arith.addf %8, %9 : vector<8x128xf32>
    %11 = arith.mulf %7, %7 : vector<8x128xf32>
    %cst_8 = arith.constant dense<0.000000e+00> : vector<8xf32>
    %12 = vector.multi_reduction <add>, %11, %cst_8 [1] : vector<8x128xf32> to vector<8xf32>
    %13 = vector.shape_cast %12 : vector<8xf32> to vector<8x1xf32>
    %14 = arith.addf %0, %13 : vector<8x1xf32>
    %15 = arith.mulf %10, %10 : vector<8x128xf32>
    %cst_9 = arith.constant dense<0.000000e+00> : vector<8xf32>
    %16 = vector.multi_reduction <add>, %15, %cst_9 [1] : vector<8x128xf32> to vector<8xf32>
    %17 = vector.shape_cast %16 : vector<8xf32> to vector<8x1xf32>
    %18 = arith.addf %1, %17 : vector<8x1xf32>
    %19 = math.sqrt %14 : vector<8x1xf32>
    %20 = math.sqrt %18 : vector<8x1xf32>
    %21 = arith.subf %19, %20 : vector<8x1xf32>
    %cst_10 = arith.constant 2.000000e-01 : f32
    %22 = vector.broadcast %cst_10 : f32 to vector<8x1xf32>
    %23 = arith.addf %21, %22 : vector<8x1xf32>
    %cst_11 = arith.constant 2.000000e-02 : f32
    %24 = vector.broadcast %cst_11 : f32 to vector<8x1xf32>
    %25 = arith.maximumf %23, %24 : vector<8x1xf32>
    %c0_12 = arith.constant 0 : index
    %c0_13 = arith.constant 0 : index
    %26 = vector.load %arg4[%c0_12, %c0_13] : memref<8x1xf32, #tpu.memory_space<vmem>>, vector<8x1xf32>
    tpu.vector_store %arg4[%c0_12, %c0_13], %25 {strides = array<i32>} : memref<8x1xf32, #tpu.memory_space<vmem>>, vector<8x1xf32>,
    return
  }
  func.func @transform_0(%arg0: i32) -> (i32, i32) {
    %c0_i32 = arith.constant 0 : i32
    %c0_i32_0 = arith.constant 0 : i32
    return %arg0, %c0_i32 : i32, i32
  }
  func.func @transform_1(%arg0: i32) -> (i32, i32) {
    %c0_i32 = arith.constant 0 : i32
    %c0_i32_0 = arith.constant 0 : i32
    return %arg0, %c0_i32 : i32, i32
  }
  func.func @transform_2(%arg0: i32) -> (i32, i32) {
    %c0_i32 = arith.constant 0 : i32
    %c0_i32_0 = arith.constant 0 : i32
    return %arg0, %c0_i32 : i32, i32
  }
  func.func @transform_3(%arg0: i32) -> (i32, i32) {
    %c0_i32 = arith.constant 0 : i32
    %c0_i32_0 = arith.constant 0 : i32
    return %arg0, %c0_i32 : i32, i32
  }
}

</mosaic_0001>

<llo_original>
// kernel: tpu_custom_call.1
$region0: #{tpu_custom_call.1}
  #allocation0 [shape = 'u32[]', space=smem, size = 0x4, offset = 0x4, fixed_abs, tag = 'smem constant byte address 0x4 - core index']
  #allocation1 [shape = 'u32[144,128]{1,0:T(1,128)}', space=vmem, size = 0x12000, scoped, tag = 'internal scratch']
  %s0 = inlined_call_operand.hbm [shape: f32[8,128], index: 0, kind: input, shape index: {}]
  %s1 = inlined_call_operand.hbm [shape: f32[8,128], index: 1, kind: input, shape index: {}]
  %s2 = inlined_call_operand.hbm [shape: f32[8,128], index: 2, kind: input, shape index: {}]
  %s3 = inlined_call_operand.vmem [shape: f32[8,1], index: 3, kind: output, shape index: {}]
  %s4 = sld [smem:[#allocation0]]
  $region34: #{tpu_custom_call.1} parent=0
    _
  %s6 = ssub.s32 1, %s4
  %s7 = scalar_select 0, %s6, %s4
  $region1: #{tpu_custom_call.1} parent=0
    #allocation2 [shape = 'u8[4096]{0}', space=vmem, size = 0x1000, scoped, tag = 'input window, operand 0, single buffered']
    #allocation3 [shape = 's32[1]{0}', space=sflag, size = 0x4, scoped, tag = 'scoped memory for tpu_custom_call.1']
    #allocation4 [shape = 'u8[4096]{0}', space=vmem, size = 0x1000, scoped, tag = 'input window, operand 1, single buffered']
    #allocation5 [shape = 's32[1]{0}', space=sflag, size = 0x4, scoped, tag = 'scoped memory for tpu_custom_call.1']
    #allocation6 [shape = 'u8[4096]{0}', space=vmem, size = 0x1000, scoped, tag = 'input window, operand 2, single buffered']
    %8 = vsyncpa [#allocation3], 0
    %9 = vsyncpa [#allocation5], 0
    // Predicated region
    $region2: #{tpu_custom_call.1} parent=1 // pred_check
      _
    $region3: #{tpu_custom_call.1} parent=1 // pred_check_branch
      %11 = sbr.rel (0) target = $region5
    $region4: #{tpu_custom_call.1} parent=1 // pred_region
      %s13 = ssub.s32 128, 128
      %14 = vsyncadd [#allocation3], %s13
      %s16 = sshll.u32 [#allocation2], 4
      %s17 = int_to_ptr.vmem [resolvable:$true] %s16
      %19 = dma.hbm_to_vmem [thread:$0]  %s0, 128, %s17, [#allocation3]
    $region5: #{tpu_custom_call.1} parent=1 // pred_fallthru
      _
    // Predicated region
    $region6: #{tpu_custom_call.1} parent=1 // pred_check
      _
    $region7: #{tpu_custom_call.1} parent=1 // pred_check_branch
      %21 = sbr.rel (0) target = $region9
    $region8: #{tpu_custom_call.1} parent=1 // pred_region
      %s23 = ssub.s32 128, 128
      %24 = vsyncadd [#allocation5], %s23
      %s26 = sshll.u32 [#allocation4], 4
      %s27 = int_to_ptr.vmem [resolvable:$true] %s26
      %29 = dma.hbm_to_vmem [thread:$0]  %s1, 128, %s27, [#allocation5]
    $region9: #{tpu_custom_call.1} parent=1 // pred_fallthru
      _
    // Predicated region
    $region10: #{tpu_custom_call.1} parent=1 // pred_check
      _
    $region11: #{tpu_custom_call.1} parent=1 // pred_check_branch
      %31 = sbr.rel (0) target = $region13
    $region12: #{tpu_custom_call.1} parent=1 // pred_region
      %s33 = ssub.s32 128, 128
      %34 = vsyncadd [#allocation5], %s33
      %s36 = sshll.u32 [#allocation6], 4
      %s37 = int_to_ptr.vmem [resolvable:$true] %s36
      %39 = dma.hbm_to_vmem [thread:$0]  %s2, 128, %s37, [#allocation5]
    $region13: #{tpu_custom_call.1} parent=1 // pred_fallthru
      _
    // Predicated region
    $region14: #{tpu_custom_call.1} parent=1 // pred_check
      _
    $region15: #{tpu_custom_call.1} parent=1 // pred_check_branch
      %41 = sbr.rel (0) target = $region17
    $region16: #{tpu_custom_call.1} parent=1 // pred_region
      %42 = dma.done [#allocation3], 128
    $region17: #{tpu_custom_call.1} parent=1 // pred_fallthru
      _
    // Predicated region
    $region18: #{tpu_custom_call.1} parent=1 // pred_check
      _
    $region19: #{tpu_custom_call.1} parent=1 // pred_check_branch
      %44 = sbr.rel (0) target = $region21
    $region20: #{tpu_custom_call.1} parent=1 // pred_region
      %45 = dma.done [#allocation5], 128
    $region21: #{tpu_custom_call.1} parent=1 // pred_fallthru
      _
    // Predicated region
    $region22: #{tpu_custom_call.1} parent=1 // pred_check
      _
    $region23: #{tpu_custom_call.1} parent=1 // pred_check_branch
      %47 = sbr.rel (0) target = $region25
    $region24: #{tpu_custom_call.1} parent=1 // pred_region
      %48 = dma.done [#allocation5], 128
    $region25: #{tpu_custom_call.1} parent=1 // pred_fallthru
      _
    %v49 = vld [vmem:[#allocation2] sm:$0xff]
    %v50 = vld [vmem:[#allocation4] sm:$0xff]
    %v51 = vld [vmem:[#allocation6] sm:$0xff]
    %v52 = vsub.f32 %v49, %v50
    %v53 = vadd.f32 %v52, 1e-06
    %v54 = vsub.f32 %v49, %v51
    %v55 = vadd.f32 %v54, 1e-06
    %v56 = vmul.f32 %v53, %v53
    %57 = vadd.xlane.f32.xlu0 %v56
    %v58 = vpop.xlane.xlu0 %57
    %v59 = vadd.f32 %v58, 0.0
    %v60 = vmul.f32 %v55, %v55
    %61 = vadd.xlane.f32.xlu0 %v60
    %v62 = vpop.xlane.xlu0 %61
    %v63 = vadd.f32 %v62, 0.0
    %v64 = vrsqrt.pop %v59
    %v65 = vmul.f32 %v59, %v64
    %vm66 = vcmp.eq.f32.partialorder %v59, inf
    %v67 = vsel %vm66, %v59, %v65
    %vm68 = vcmp.eq.f32.partialorder %v59, 0.0
    %v69 = vand.u32 %v59, 2147483648
    %v70 = vsel %vm68, %v69, %v67
    %v71 = vrsqrt.pop %v63
    %v72 = vmul.f32 %v63, %v71
    %vm73 = vcmp.eq.f32.partialorder %v63, inf
    %v74 = vsel %vm73, %v63, %v72
    %vm75 = vcmp.eq.f32.partialorder %v63, 0.0
    %v76 = vand.u32 %v63, 2147483648
    %v77 = vsel %vm75, %v76, %v74
    %v78 = vsub.f32 %v70, %v77
    %v79 = vadd.f32 %v78, 0.2
    %v80 = vmax.f32 %v79, 0.02
    %vm81 = vcmask 7168
    %82 = vst.msk [vmem:[%s3] sm:$0xff] %vm81, %v80
    // Predicated region
    $region26: #{tpu_custom_call.1} parent=1 // pred_check
      _
    $region27: #{tpu_custom_call.1} parent=1 // pred_check_branch
      %84 = sbr.rel (0) target = $region29
    $region28: #{tpu_custom_call.1} parent=1 // pred_region
      _
    $region29: #{tpu_custom_call.1} parent=1 // pred_fallthru
      _
    // Predicated region
    $region30: #{tpu_custom_call.1} parent=1 // pred_check
      _
    $region31: #{tpu_custom_call.1} parent=1 // pred_check_branch
      %86 = sbr.rel (0) target = $region33
    $region32: #{tpu_custom_call.1} parent=1 // pred_region
      _
    $region33: #{tpu_custom_call.1} parent=1 // pred_fallthru
      _
    %87 = vsyncpa [#allocation3], 1
    %88 = vsyncpa [#allocation5], 1

</llo_original>
